<compile_context>
chip_gen: v5e
topology: v5e:2x2
jax: 0.10.0
libtpu: 0.0.40
codegen_flags: <defaults>
</compile_context>

<pallas_src>
import functools
import math

import jax
import jax.numpy as jnp
from jax.experimental import pallas as pl
from jax.experimental.pallas import tpu as pltpu


def _round_up(x, m):
    return ((x + m - 1) // m) * m


def _regressor_self_att_kernel(x_ref, w_att_ref, w_fc1_ref, w_fc2_ref, vecs_ref,
                               out_ref, att_ref, *, d_in, h1, h2):
    x = x_ref[...]

    # Packed row vectors: row0 = b_att, row1 = b_fc1, row2 = b_fc2, row3 = w_fc3.
    b_att = vecs_ref[0:1, :d_in]
    b_fc1 = vecs_ref[1:2, :h1]
    b_fc2 = vecs_ref[2:3, :h2]
    w_fc3 = vecs_ref[3:4, :h2]

    # Fused attention gate: att = x @ (W_att0 @ W_att1) + b_att0 @ W_att1
    att = jnp.dot(x, w_att_ref[...], preferred_element_type=jnp.float32) + b_att

    # Gate the input.
    xg = x * att

    # fc1 -> relu
    h = jnp.dot(xg, w_fc1_ref[...], preferred_element_type=jnp.float32) + b_fc1
    h = jnp.maximum(h, 0.0)

    # fc2 -> relu
    h = jnp.dot(h, w_fc2_ref[...], preferred_element_type=jnp.float32) + b_fc2
    h = jnp.maximum(h, 0.0)

    # fc3 (no bias, out_features=1): VPU multiply + lane reduction instead of a
    # 1-lane MXU pass.
    out = jnp.sum(h * w_fc3, axis=-1, keepdims=True)

    out_ref[...] = out.astype(out_ref.dtype)
    att_ref[...] = att.astype(att_ref.dtype)


def regressor_self_att_forward(packed_params, x, *, tm_max=512):
    """x: (B, inputNum). Returns (out (B,1), att (B, inputNum))."""
    w_att, w_fc1, w_fc2, vecs = packed_params
    B, d_in = x.shape
    h1 = w_fc1.shape[-1]
    h2 = w_fc2.shape[-1]

    # Batch tile: multiple of 8 (f32 sublanes), capped so double-buffered
    # x/att blocks stay far below VMEM limits on every generation (incl. v7x).
    tm = min(tm_max, _round_up(B, 8))
    b_pad = _round_up(B, tm)
    if b_pad != B:
        x_in = jnp.zeros((b_pad, d_in), x.dtype).at[:B].set(x)
    else:
        x_in = x

    grid = (pl.cdiv(b_pad, tm),)
    kernel = functools.partial(_regressor_self_att_kernel, d_in=d_in, h1=h1, h2=h2)

    out, att = pl.pallas_call(
        kernel,
        out_shape=(
            jax.ShapeDtypeStruct((b_pad, 1), x.dtype),      # out
            jax.ShapeDtypeStruct((b_pad, d_in), x.dtype),   # att
        ),
        grid=grid,
        in_specs=[
            pl.BlockSpec((tm, d_in), lambda i: (i, 0)),            # x (batch-blocked)
            pl.BlockSpec(w_att.shape, lambda i: (0, 0)),           # resident weights
            pl.BlockSpec(w_fc1.shape, lambda i: (0, 0)),
            pl.BlockSpec(w_fc2.shape, lambda i: (0, 0)),
            pl.BlockSpec(vecs.shape, lambda i: (0, 0)),            # packed bias rows
        ],
        out_specs=(
            pl.BlockSpec((tm, 1), lambda i: (i, 0)),
            pl.BlockSpec((tm, d_in), lambda i: (i, 0)),
        ),
        compiler_params=pltpu.CompilerParams(
            dimension_semantics=("parallel",)),
    )(x_in, w_att, w_fc1, w_fc2, vecs)

    if b_pad != B:
        out = out[:B]
        att = att[:B]
    return out, att


def _init_linear(key, fan_in, fan_out, bias=True, dtype=jnp.float32):
    # PyTorch nn.Linear default init: U(-1/sqrt(fan_in), 1/sqrt(fan_in)).
    kw, kb = jax.random.split(key)
    bound = 1.0 / math.sqrt(fan_in)
    w = jax.random.uniform(kw, (fan_in, fan_out), dtype, minval=-bound, maxval=bound)
    if not bias:
        return w, None
    b = jax.random.uniform(kb, (1, fan_out), dtype, minval=-bound, maxval=bound)
    return w, b


def init_regressor_self_att(key, input_num, hidden_1, hidden_2):
    """Raw (PyTorch-equivalent) parameters, weights stored (in, out)."""
    k0, k1, k2, k3, k4 = jax.random.split(key, 5)
    w_att0, b_att0 = _init_linear(k0, input_num, hidden_1, bias=True)
    w_att1, _ = _init_linear(k1, hidden_1, input_num, bias=False)
    w_fc1, b_fc1 = _init_linear(k2, input_num, hidden_1, bias=True)
    w_fc2, b_fc2 = _init_linear(k3, hidden_1, hidden_2, bias=True)
    w_fc3, _ = _init_linear(k4, hidden_2, 1, bias=False)
    return (w_att0, b_att0, w_att1, w_fc1, b_fc1, w_fc2, b_fc2, w_fc3)


def prepare_params(raw_params):
    """One-time param prep: fuse att0@att1 and pack all row vectors."""
    w_att0, b_att0, w_att1, w_fc1, b_fc1, w_fc2, b_fc2, w_fc3 = raw_params
    d_in = w_att0.shape[0]
    h1 = w_fc1.shape[1]
    h2 = w_fc2.shape[1]
    # Exact-in-algebra fusion of the two linear attention layers.
    w_att = w_att0 @ w_att1                       # (d_in, d_in)
    b_att = b_att0 @ w_att1                       # (1, d_in)
    # Pack the four (1, N) row vectors into one (4, D_max) buffer (one DMA).
    d_max = max(d_in, h1, h2)
    vecs = jnp.zeros((4, d_max), w_att.dtype)
    vecs = vecs.at[0, :d_in].set(b_att[0])
    vecs = vecs.at[1, :h1].set(b_fc1[0])
    vecs = vecs.at[2, :h2].set(b_fc2[0])
    vecs = vecs.at[3, :h2].set(w_fc3[:, 0])       # fc3 weight as a row
    return (w_att, w_fc1, w_fc2, vecs)


def _reference_forward(raw_params, x):
    """Pure-JAX reference using the raw (unfused) parameters."""
    w_att0, b_att0, w_att1, w_fc1, b_fc1, w_fc2, b_fc2, w_fc3 = raw_params
    att = (x @ w_att0 + b_att0) @ w_att1
    xg = x * att
    h = jnp.maximum(xg @ w_fc1 + b_fc1, 0.0)
    h = jnp.maximum(h @ w_fc2 + b_fc2, 0.0)
    out = h @ w_fc3
    return out, att


if __name__ == "__main__":
    key = jax.random.PRNGKey(0)
    k_params, k_x = jax.random.split(key)

    batch = 8
    input_num = 32
    hidden_1 = 64
    hidden_2 = 32
    # is_droup = None  (dropout disabled / eval mode)

    raw_params = init_regressor_self_att(k_params, input_num, hidden_1, hidden_2)
    packed_params = prepare_params(raw_params)
    x = jax.random.normal(k_x, (batch, input_num), jnp.float32)

    out, att = regressor_self_att_forward(packed_params, x)
    out, att = jax.block_until_ready((out, att))
    assert out.shape == (batch, 1), out.shape
    assert att.shape == (batch, input_num), att.shape

    ref_out, ref_att = _reference_forward(raw_params, x)
    # Tolerance relaxed slightly: the pre-fused W_att0 @ W_att1 is exact in
    # algebra but reorders fp accumulation vs. the two-dot reference.
    assert jnp.allclose(out, ref_out, atol=1e-4, rtol=1e-4), "out mismatch vs reference"
    assert jnp.allclose(att, ref_att, atol=1e-4, rtol=1e-4), "att mismatch vs reference"

    print("KERNEL_OK")
</pallas_src>

<mosaic_0001>
module attributes {stable_mosaic.version = 11 : i64} {
  func.func @_regressor_self_att_kernel(%arg0: i32, %arg1: memref<8x32xf32, #tpu.memory_space<vmem>>, %arg2: memref<32x32xf32, #tpu.memory_space<vmem>>, %arg3: memref<32x64xf32, #tpu.memory_space<vmem>>, %arg4: memref<64x32xf32, #tpu.memory_space<vmem>>, %arg5: memref<4x64xf32, #tpu.memory_space<vmem>>, %arg6: memref<8x1xf32, #tpu.memory_space<vmem>>, %arg7: memref<8x32xf32, #tpu.memory_space<vmem>>) attributes {dimension_semantics = [#tpu.dimension_semantics<parallel>], iteration_bounds = array<i64: 1>, scalar_prefetch = 0 : i64, scratch_operands = 0 : i64, tpu.core_type = #tpu.core_type<tc>, window_params = [{transform_indices = @transform_0, window_bounds = array<i64: 8, 32>}, {pipeline_mode = #tpu.pipeline_mode<synchronous>, transform_indices = @transform_1, window_bounds = array<i64: 32, 32>}, {pipeline_mode = #tpu.pipeline_mode<synchronous>, transform_indices = @transform_2, window_bounds = array<i64: 32, 64>}, {pipeline_mode = #tpu.pipeline_mode<synchronous>, transform_indices = @transform_3, window_bounds = array<i64: 64, 32>}, {pipeline_mode = #tpu.pipeline_mode<synchronous>, transform_indices = @transform_4, window_bounds = array<i64: 4, 64>}, {transform_indices = @transform_5, window_bounds = array<i64: 8, 1>}, {transform_indices = @transform_6, window_bounds = array<i64: 8, 32>}]} {
    %c0 = arith.constant 0 : index
    %c0_0 = arith.constant 0 : index
    %0 = vector.load %arg1[%c0, %c0_0] : memref<8x32xf32, #tpu.memory_space<vmem>>, vector<8x32xf32>
    %c0_1 = arith.constant 0 : index
    %c0_2 = arith.constant 0 : index
    %1 = vector.load %arg5[%c0_1, %c0_2] : memref<4x64xf32, #tpu.memory_space<vmem>>, vector<1x32xf32>
    %c1 = arith.constant 1 : index
    %c0_3 = arith.constant 0 : index
    %2 = vector.load %arg5[%c1, %c0_3] : memref<4x64xf32, #tpu.memory_space<vmem>>, vector<1x64xf32>
    %c2 = arith.constant 2 : index
    %c0_4 = arith.constant 0 : index
    %3 = vector.load %arg5[%c2, %c0_4] : memref<4x64xf32, #tpu.memory_space<vmem>>, vector<1x32xf32>
    %c3 = arith.constant 3 : index
    %c0_5 = arith.constant 0 : index
    %4 = vector.load %arg5[%c3, %c0_5] : memref<4x64xf32, #tpu.memory_space<vmem>>, vector<1x32xf32>
    %c0_6 = arith.constant 0 : index
    %c0_7 = arith.constant 0 : index
    %5 = vector.load %arg2[%c0_6, %c0_7] : memref<32x32xf32, #tpu.memory_space<vmem>>, vector<32x32xf32>
    %cst = arith.constant dense<0.000000e+00> : vector<8x32xf32>
    %6 = tpu.matmul %0, %5, %cst {dimension_numbers = #tpu.dot_dimension_numbers<[1], [0], [0], [1], [0, 0, 1, 1], [], []>} : vector<8x32xf32>, vector<32x32xf32>, vector<8x32xf32> -> vector<8x32xf32>
    %7 = vector.broadcast %1 : vector<1x32xf32> to vector<8x32xf32>
    %8 = arith.addf %6, %7 : vector<8x32xf32>
    %9 = arith.mulf %0, %8 : vector<8x32xf32>
    %c0_8 = arith.constant 0 : index
    %c0_9 = arith.constant 0 : index
    %10 = vector.load %arg3[%c0_8, %c0_9] : memref<32x64xf32, #tpu.memory_space<vmem>>, vector<32x64xf32>
    %cst_10 = arith.constant dense<0.000000e+00> : vector<8x64xf32>
    %11 = tpu.matmul %9, %10, %cst_10 {dimension_numbers = #tpu.dot_dimension_numbers<[1], [0], [0], [1], [0, 0, 1, 1], [], []>} : vector<8x32xf32>, vector<32x64xf32>, vector<8x64xf32> -> vector<8x64xf32>
    %12 = vector.broadcast %2 : vector<1x64xf32> to vector<8x64xf32>
    %13 = arith.addf %11, %12 : vector<8x64xf32>
    %cst_11 = arith.constant 0.000000e+00 : f32
    %14 = vector.broadcast %cst_11 : f32 to vector<8x64xf32>
    %15 = arith.maximumf %13, %14 : vector<8x64xf32>
    %c0_12 = arith.constant 0 : index
    %c0_13 = arith.constant 0 : index
    %16 = vector.load %arg4[%c0_12, %c0_13] : memref<64x32xf32, #tpu.memory_space<vmem>>, vector<64x32xf32>
    %cst_14 = arith.constant dense<0.000000e+00> : vector<8x32xf32>
    %17 = tpu.matmul %15, %16, %cst_14 {dimension_numbers = #tpu.dot_dimension_numbers<[1], [0], [0], [1], [0, 0, 1, 1], [], []>} : vector<8x64xf32>, vector<64x32xf32>, vector<8x32xf32> -> vector<8x32xf32>
    %18 = vector.broadcast %3 : vector<1x32xf32> to vector<8x32xf32>
    %19 = arith.addf %17, %18 : vector<8x32xf32>
    %cst_15 = arith.constant 0.000000e+00 : f32
    %20 = vector.broadcast %cst_15 : f32 to vector<8x32xf32>
    %21 = arith.maximumf %19, %20 : vector<8x32xf32>
    %22 = vector.broadcast %4 : vector<1x32xf32> to vector<8x32xf32>
    %23 = arith.mulf %21, %22 : vector<8x32xf32>
    %cst_16 = arith.constant dense<0.000000e+00> : vector<8xf32>
    %24 = vector.multi_reduction <add>, %23, %cst_16 [1] : vector<8x32xf32> to vector<8xf32>
    %25 = vector.shape_cast %24 : vector<8xf32> to vector<8x1xf32>
    %c0_17 = arith.constant 0 : index
    %c0_18 = arith.constant 0 : index
    %26 = vector.load %arg6[%c0_17, %c0_18] : memref<8x1xf32, #tpu.memory_space<vmem>>, vector<8x1xf32>
    tpu.vector_store %arg6[%c0_17, %c0_18], %25 {strides = array<i32>} : memref<8x1xf32, #tpu.memory_space<vmem>>, vector<8x1xf32>,
    %c0_19 = arith.constant 0 : index
    %c0_20 = arith.constant 0 : index
    %27 = vector.load %arg7[%c0_19, %c0_20] : memref<8x32xf32, #tpu.memory_space<vmem>>, vector<8x32xf32>
    tpu.vector_store %arg7[%c0_19, %c0_20], %8 {strides = array<i32>} : memref<8x32xf32, #tpu.memory_space<vmem>>, vector<8x32xf32>,
    return
  }
  func.func @transform_0(%arg0: i32) -> (i32, i32) {
    %c0_i32 = arith.constant 0 : i32
    %c0_i32_0 = arith.constant 0 : i32
    return %arg0, %c0_i32 : i32, i32
  }
  func.func @transform_1(%arg0: i32) -> (i32, i32) {
    %c0_i32 = arith.constant 0 : i32
    %c0_i32_0 = arith.constant 0 : i32
    %c0_i32_1 = arith.constant 0 : i32
    return %c0_i32, %c0_i32_0 : i32, i32
  }
  func.func @transform_2(%arg0: i32) -> (i32, i32) {
    %c0_i32 = arith.constant 0 : i32
    %c0_i32_0 = arith.constant 0 : i32
    %c0_i32_1 = arith.constant 0 : i32
    return %c0_i32, %c0_i32_0 : i32, i32
  }
  func.func @transform_3(%arg0: i32) -> (i32, i32) {
    %c0_i32 = arith.constant 0 : i32
    %c0_i32_0 = arith.constant 0 : i32
    %c0_i32_1 = arith.constant 0 : i32
    return %c0_i32, %c0_i32_0 : i32, i32
  }
  func.func @transform_4(%arg0: i32) -> (i32, i32) {
    %c0_i32 = arith.constant 0 : i32
    %c0_i32_0 = arith.constant 0 : i32
    %c0_i32_1 = arith.constant 0 : i32
    return %c0_i32, %c0_i32_0 : i32, i32
  }
  func.func @transform_5(%arg0: i32) -> (i32, i32) {
    %c0_i32 = arith.constant 0 : i32
    %c0_i32_0 = arith.constant 0 : i32
    return %arg0, %c0_i32 : i32, i32
  }
  func.func @transform_6(%arg0: i32) -> (i32, i32) {
    %c0_i32 = arith.constant 0 : i32
    %c0_i32_0 = arith.constant 0 : i32
    return %arg0, %c0_i32 : i32, i32
  }
}

</mosaic_0001>

<llo_original>
// kernel: tpu_custom_call.1
$region0: #{tpu_custom_call.1}
  #allocation0 [shape = 'u32[]', space=smem, size = 0x4, offset = 0x4, fixed_abs, tag = 'smem constant byte address 0x4 - core index']
  #allocation1 [shape = 'u32[72,128]{1,0:T(1,128)}', space=vmem, size = 0x9000, scoped, tag = 'internal scratch']
  %s0 = inlined_call_operand.vmem [shape: f32[8,32], index: 0, kind: input, shape index: {}]
  %s1 = inlined_call_operand.vmem [shape: f32[32,32], index: 1, kind: input, shape index: {}]
  %s2 = inlined_call_operand.vmem [shape: f32[32,64], index: 2, kind: input, shape index: {}]
  %s3 = inlined_call_operand.vmem [shape: f32[64,32], index: 3, kind: input, shape index: {}]
  %s4 = inlined_call_operand.vmem [shape: f32[4,64], index: 4, kind: input, shape index: {}]
  %s5 = inlined_call_operand.vmem [shape: f32[8,1], index: 5, kind: output, shape index: {0}]
  %s6 = inlined_call_operand.hbm [shape: f32[8,32], index: 6, kind: output, shape index: {1}]
  %7 = xla_tuple %s5, %s6
  %s8 = sld [smem:[#allocation0]]
  $region38: #{tpu_custom_call.1} parent=0
    _
  %s10 = ssub.s32 1, %s8
  %s11 = scalar_select 0, %s10, %s8
  $region1: #{tpu_custom_call.1} parent=0
    #allocation2 [shape = 'u8[4096]{0}', space=vmem, size = 0x1000, scoped, tag = 'output window, operand 1, single buffered']
    #allocation3 [shape = 's32[1]{0}', space=sflag, size = 0x4, scoped, tag = 'scoped memory for tpu_custom_call.1']
    %12 = vsyncpa [#allocation3], 0
    // Predicated region
    $region2: #{tpu_custom_call.1} parent=1 // pred_check
      _
    $region3: #{tpu_custom_call.1} parent=1 // pred_check_branch
      %14 = sbr.rel (0) target = $region5
    $region4: #{tpu_custom_call.1} parent=1 // pred_region
      _
    $region5: #{tpu_custom_call.1} parent=1 // pred_fallthru
      _
    // Predicated region
    $region6: #{tpu_custom_call.1} parent=1 // pred_check
      _
    $region7: #{tpu_custom_call.1} parent=1 // pred_check_branch
      %16 = sbr.rel (0) target = $region9
    $region8: #{tpu_custom_call.1} parent=1 // pred_region
      _
    $region9: #{tpu_custom_call.1} parent=1 // pred_fallthru
      _
    // Predicated region
    $region10: #{tpu_custom_call.1} parent=1 // pred_check
      _
    $region11: #{tpu_custom_call.1} parent=1 // pred_check_branch
      %18 = sbr.rel (0) target = $region13
    $region12: #{tpu_custom_call.1} parent=1 // pred_region
      _
    $region13: #{tpu_custom_call.1} parent=1 // pred_fallthru
      _
    // Predicated region
    $region14: #{tpu_custom_call.1} parent=1 // pred_check
      _
    $region15: #{tpu_custom_call.1} parent=1 // pred_check_branch
      %20 = sbr.rel (0) target = $region17
    $region16: #{tpu_custom_call.1} parent=1 // pred_region
      _
    $region17: #{tpu_custom_call.1} parent=1 // pred_fallthru
      _
    // Predicated region
    $region18: #{tpu_custom_call.1} parent=1 // pred_check
      _
    $region19: #{tpu_custom_call.1} parent=1 // pred_check_branch
      %22 = sbr.rel (0) target = $region21
    $region20: #{tpu_custom_call.1} parent=1 // pred_region
      _
    $region21: #{tpu_custom_call.1} parent=1 // pred_fallthru
      _
    %v23 = vld [vmem:[%s0] sm:$0xff]
    %v24 = vld [vmem:[%s4] sm:$0x1]
    %v25 = vld [vmem:[%s4 + $0x1] sm:$0x1]
    %v26 = vld [vmem:[%s4 + $0x2] sm:$0x1]
    %v27 = vld [vmem:[%s4 + $0x3] sm:$0x1]
    %v28 = vld [vmem:[%s1] sm:$0xff]
    %v29 = vld [vmem:[%s1 + $0x8] sm:$0xff]
    %v30 = vld [vmem:[%s1 + $0x10] sm:$0xff]
    %v31 = vld [vmem:[%s1 + $0x18] sm:$0xff]
    %v32 = vperm.slane %v24, 0
    %vm33 = vcmask 261120
    %v35 = vsel %vm33, %v23, 0
    %37 = vmatpush.msra.mxu0 0.0
    %38 = vmatpush.msra.mxu0 0.0
    %39 = vmatpush.msra.mxu0 0.0
    %40 = vmatpush.msra.mxu0 0.0
    %41 = vmatpush.msra.mxu0 0.0
    %42 = vmatpush.msra.mxu0 0.0
    %43 = vmatpush.msra.mxu0 0.0
    %44 = vmatpush.msra.mxu0 0.0
    %45 = vmatpush.msra.mxu0 0.0
    %46 = vmatpush.msra.mxu0 0.0
    %47 = vmatpush.msra.mxu0 0.0
    %48 = vmatpush.msra.mxu0 0.0
    %49 = vmatpush.msra.mxu0 %v31
    %50 = vmatpush.msra.mxu0 %v30
    %51 = vmatpush.msra.mxu0 %v29
    %52 = vmatpush.msra.mxu0 %v28
    %53 = vmatmul.f32.gmra.mxu0 %v35
    %v54 = vpop.f32.mrf.mxu0
    %v55 = vadd.f32 %v32, %v54
    %56 = vdwg.mxu0
    %v57 = vmul.f32 %v23, %v55
    %v58 = vld [vmem:[%s2] sm:$0xff]
    %v59 = vld [vmem:[%s2 + $0x8] sm:$0xff]
    %v60 = vld [vmem:[%s2 + $0x10] sm:$0xff]
    %v61 = vld [vmem:[%s2 + $0x18] sm:$0xff]
    %v62 = vperm.slane %v25, 0
    %v64 = vsel %vm33, %v57, 0
    %66 = vmatpush.msra.mxu0 0.0
    %67 = vmatpush.msra.mxu0 0.0
    %68 = vmatpush.msra.mxu0 0.0
    %69 = vmatpush.msra.mxu0 0.0
    %70 = vmatpush.msra.mxu0 0.0
    %71 = vmatpush.msra.mxu0 0.0
    %72 = vmatpush.msra.mxu0 0.0
    %73 = vmatpush.msra.mxu0 0.0
    %74 = vmatpush.msra.mxu0 0.0
    %75 = vmatpush.msra.mxu0 0.0
    %76 = vmatpush.msra.mxu0 0.0
    %77 = vmatpush.msra.mxu0 0.0
    %78 = vmatpush.msra.mxu0 %v61
    %79 = vmatpush.msra.mxu0 %v60
    %80 = vmatpush.msra.mxu0 %v59
    %81 = vmatpush.msra.mxu0 %v58
    %82 = vmatmul.f32.gmra.mxu0 %v64
    %v83 = vpop.f32.mrf.mxu0
    %v84 = vadd.f32 %v62, %v83
    %85 = vdwg.mxu0
    %v86 = vmax.f32 %v84, 0.0
    %v87 = vld [vmem:[%s3] sm:$0xff]
    %v88 = vld [vmem:[%s3 + $0x8] sm:$0xff]
    %v89 = vld [vmem:[%s3 + $0x10] sm:$0xff]
    %v90 = vld [vmem:[%s3 + $0x18] sm:$0xff]
    %v91 = vld [vmem:[%s3 + $0x20] sm:$0xff]
    %v92 = vld [vmem:[%s3 + $0x28] sm:$0xff]
    %v93 = vld [vmem:[%s3 + $0x30] sm:$0xff]
    %v94 = vld [vmem:[%s3 + $0x38] sm:$0xff]
    %v95 = vperm.slane %v26, 0
    %vm96 = vcmask 523264
    %v98 = vsel %vm96, %v86, 0
    %100 = vmatpush.msra.mxu0 0.0
    %101 = vmatpush.msra.mxu0 0.0
    %102 = vmatpush.msra.mxu0 0.0
    %103 = vmatpush.msra.mxu0 0.0
    %104 = vmatpush.msra.mxu0 0.0
    %105 = vmatpush.msra.mxu0 0.0
    %106 = vmatpush.msra.mxu0 0.0
    %107 = vmatpush.msra.mxu0 0.0
    %108 = vmatpush.msra.mxu0 %v94
    %109 = vmatpush.msra.mxu0 %v93
    %110 = vmatpush.msra.mxu0 %v92
    %111 = vmatpush.msra.mxu0 %v91
    %112 = vmatpush.msra.mxu0 %v90
    %113 = vmatpush.msra.mxu0 %v89
    %114 = vmatpush.msra.mxu0 %v88
    %115 = vmatpush.msra.mxu0 %v87
    %116 = vmatmul.f32.gmra.mxu0 %v98
    %v117 = vpop.f32.mrf.mxu0
    %v118 = vadd.f32 %v95, %v117
    %119 = vdwg.mxu0
    %v120 = vmax.f32 %v118, 0.0
    %v121 = vperm.slane %v27, 0
    %v122 = vmul.f32 %v120, %v121
    %v123 = vsel %vm33, %v122, 0.0
    %124 = vadd.xlane.f32.xlu0 %v123
    %v125 = vpop.xlane.xlu0 %124
    %vm126 = vcmask 7168
    %127 = vst.msk [vmem:[%s5] sm:$0xff] %vm126, %v125
    %128 = vst.msk [vmem:[#allocation2] sm:$0xff] %vm33, %v55
    // Predicated region
    $region22: #{tpu_custom_call.1} parent=1 // pred_check
      _
    $region23: #{tpu_custom_call.1} parent=1 // pred_check_branch
      %130 = sbr.rel (0) target = $region25
    $region24: #{tpu_custom_call.1} parent=1 // pred_region
      _
    $region25: #{tpu_custom_call.1} parent=1 // pred_fallthru
      _
    // Predicated region
    $region26: #{tpu_custom_call.1} parent=1 // pred_check
      _
    $region27: #{tpu_custom_call.1} parent=1 // pred_check_branch
      %132 = sbr.rel (0) target = $region29
    $region28: #{tpu_custom_call.1} parent=1 // pred_region
      %134 = vsyncadd [#allocation3], 0
      %s136 = sshll.u32 [#allocation2], 4
      %s137 = int_to_ptr.vmem [resolvable:$true] %s136
      %s138 = sshll.u32 %s6, 4
      %s139 = int_to_ptr.hbm [resolvable:$true] %s138
      %141 = dma.vmem_to_hbm [thread:$0]  %s137, 128, %s139, [#allocation3]
    $region29: #{tpu_custom_call.1} parent=1 // pred_fallthru
      _
    // Predicated region
    $region30: #{tpu_custom_call.1} parent=1 // pred_check
      _
    $region31: #{tpu_custom_call.1} parent=1 // pred_check_branch
      %143 = sbr.rel (0) target = $region33
    $region32: #{tpu_custom_call.1} parent=1 // pred_region
      _
    $region33: #{tpu_custom_call.1} parent=1 // pred_fallthru
      _
    // Predicated region
    $region34: #{tpu_custom_call.1} parent=1 // pred_check
      _
    $region35: #{tpu_custom_call.1} parent=1 // pred_check_branch
      %145 = sbr.rel (0) target = $region37
    $region36: #{tpu_custom_call.1} parent=1 // pred_region
      %147 = dma.done [#allocation3], 128
    $region37: #{tpu_custom_call.1} parent=1 // pred_fallthru
      _
    %148 = vsyncpa [#allocation3], 1

</llo_original>
